<compile_context>
chip_gen: v7x
topology: tpu7x:2x2x1
jax: 0.10.0
libtpu: 0.0.40
codegen_flags: <defaults>
</compile_context>

<pallas_src>
import functools
import math

import jax
import jax.numpy as jnp
from jax import lax
from jax.experimental import pallas as pl
from jax.experimental.pallas import tpu as pltpu

_LOG2E = 1.4426950408889634


def _flash_qkv_kernel(q_ref, k_ref, v_ref, o_ref, m_sc, l_sc, acc_sc,
                      *, q_scale, tkv, valid_len, mask_kv):
    ki = pl.program_id(2)

    @pl.when(ki == 0)
    def _init():
        m_sc[...] = jnp.full_like(m_sc, -jnp.inf)
        l_sc[...] = jnp.zeros_like(l_sc)
        acc_sc[...] = jnp.zeros_like(acc_sc)

    # Fold 1/sqrt(ch) * log2(e) into the (C, tq) q tile: the large (tkv, tq)
    # score tile never sees a per-element scale multiply, and exp -> exp2.
    q = q_ref[...] * q_scale          # (Hb, C, tq), input dtype
    k = k_ref[...]                    # (Hb, C, tkv)
    v = v_ref[...]                    # (Hb, C, tkv)

    # w2[h, s, t] = log2(e)/sqrt(ch) * sum_c k[h, c, s] * q[h, c, t]
    # -> (Hb, tkv, tq), f32 accumulation on the MXU.
    w2 = lax.dot_general(
        k, q, (((1,), (1,)), ((0,), (0,))),
        preferred_element_type=jnp.float32,
    )

    if mask_kv:
        # Only emitted when T was padded: mask padded key columns to -inf.
        s_idx = ki * tkv + lax.broadcasted_iota(jnp.int32, w2.shape, 1)
        w2 = jnp.where(s_idx < valid_len, w2, -jnp.inf)

    m_prev = m_sc[...]                                        # (Hb, 1, tq)
    m_new = jnp.maximum(m_prev, jnp.max(w2, axis=1, keepdims=True))
    alpha = jnp.exp2(m_prev - m_new)                          # (Hb, 1, tq)
    p = jnp.exp2(w2 - m_new)                                  # (Hb, tkv, tq), f32

    l_sc[...] = alpha * l_sc[...] + jnp.sum(p, axis=1, keepdims=True)

    # pv[h, c, t] = sum_s v[h, c, s] * p[h, s, t]  -> (Hb, C, tq), f32 accum
    pv = lax.dot_general(
        v, p.astype(v.dtype), (((2,), (1,)), ((0,), (0,))),
        preferred_element_type=jnp.float32,
    )
    acc_sc[...] = alpha * acc_sc[...] + pv
    m_sc[...] = m_new

    @pl.when(ki == pl.num_programs(2) - 1)
    def _finalize():
        # Exact normalization: one small divide over the (Hb, 1, tq) stats,
        # then a broadcast multiply.  (The approximate EUP reciprocal was the
        # source of the >1e-3 mismatch in the previous version.)
        inv_l = 1.0 / l_sc[...]
        o_ref[...] = (acc_sc[...] * inv_l).astype(o_ref.dtype)


def _round_up(x, m):
    return ((x + m - 1) // m) * m


def _pick_seq_tiles(length_padded):
    """length_padded is a multiple of 128.  tq/tkv must divide it.
    tkv capped at 256 (v5e has a single vector-store slot)."""
    def pick(cands):
        for c in cands:
            if c <= length_padded and length_padded % c == 0:
                return c
        return length_padded

    tq = pick((256, 128))
    tkv = pick((256, 128))
    return tq, tkv


def _vmem_budget_and_limit():
    """Generation-aware budgets.  v7x has 64 MiB VMEM (32 MiB scoped default)
    so the per-step working-set budget stays ~16 MiB there; v5e/v6e (128 MiB)
    get ~24-32 MiB working set and a 64 MiB scoped limit."""
    try:
        cap = int(pltpu.get_tpu_info().vmem_capacity_bytes)
    except Exception:
        cap = 64 * 1024 * 1024
    limit = int(min(cap // 2, 64 * 1024 * 1024))
    budget = int(min(cap // 4, 24 * 1024 * 1024))
    return budget, limit


def _choose_head_batch(B, chp, tq, tkv, n_q_tiles, itemsize, budget_bytes):
    """Heads per grid step: amortizes ~0.35us/step overhead and enlarges DMAs.
    Per-head working set includes double-buffered q/k/v/o blocks, the f32
    scratch, and ~4x (tkv, tq) f32 compiler temporaries for w/p."""
    blocks = 2 * chp * (2 * tq + 2 * tkv) * itemsize
    scratch = (chp * tq + 2 * tq) * 4
    temps = 4 * tkv * tq * 4
    per_head = blocks + scratch + temps
    hb = max(1, min(B, budget_bytes // max(per_head, 1)))
    # Keep the grid exact and leave >= 2 parallel steps (v7x has 2 TCs).
    while hb > 1 and (B % hb != 0 or (B // hb) * n_q_tiles < 2):
        hb -= 1
    return hb


def qkv_attention(qkv: jax.Array, n_heads: int) -> jax.Array:
    """Pallas equivalent of QKVAttention.forward.

    :param qkv: [N, 3 * H * C, T] array of Qs, Ks, Vs.
    :return:    [N, H * C, T] array after attention.
    """
    bs, width, length = qkv.shape
    assert width % (3 * n_heads) == 0
    ch = width // (3 * n_heads)
    scale = 1.0 / math.sqrt(math.sqrt(ch))
    # scale applied to q and k in the reference == scale^2 on the scores;
    # folded (with log2e for exp2) into the q tile inside the kernel.
    q_scale = scale * scale * _LOG2E

    # chunk(3, dim=1) then .view(bs * n_heads, ch, length) — plain JAX glue.
    q, k, v = jnp.split(qkv, 3, axis=1)
    B = bs * n_heads
    q = q.reshape(B, ch, length)
    k = k.reshape(B, ch, length)
    v = v.reshape(B, ch, length)

    # Pad channels to a multiple of 8 (sublane) — zero channels contribute 0
    # to both contractions; padded output channels are sliced off.
    chp = max(8, _round_up(ch, 8))
    if chp != ch:
        pad_c = ((0, 0), (0, chp - ch), (0, 0))
        q, k, v = jnp.pad(q, pad_c), jnp.pad(k, pad_c), jnp.pad(v, pad_c)

    # Pad sequence to a multiple of 128 (lane) — padded keys are masked to
    # -inf inside the kernel; padded query columns are sliced off.
    tpad = _round_up(length, 128)
    if tpad != length:
        pad_t = ((0, 0), (0, 0), (0, tpad - length))
        q, k, v = jnp.pad(q, pad_t), jnp.pad(k, pad_t), jnp.pad(v, pad_t)

    tq, tkv = _pick_seq_tiles(tpad)
    n_q_tiles = tpad // tq
    budget, vmem_limit = _vmem_budget_and_limit()
    hb = _choose_head_batch(B, chp, tq, tkv, n_q_tiles,
                            qkv.dtype.itemsize, budget)

    grid = (B // hb, n_q_tiles, tpad // tkv)

    qo_spec = pl.BlockSpec((hb, chp, tq), lambda g, qi, ki: (g, 0, qi))
    kv_spec = pl.BlockSpec((hb, chp, tkv), lambda g, qi, ki: (g, 0, ki))

    kernel = functools.partial(
        _flash_qkv_kernel,
        q_scale=q_scale, tkv=tkv, valid_len=length, mask_kv=(tpad != length))

    out = pl.pallas_call(
        kernel,
        out_shape=jax.ShapeDtypeStruct((B, chp, tpad), qkv.dtype),
        grid_spec=pltpu.PrefetchScalarGridSpec(
            num_scalar_prefetch=0,
            grid=grid,
            in_specs=[qo_spec, kv_spec, kv_spec],
            out_specs=qo_spec,
            scratch_shapes=[
                pltpu.VMEM((hb, 1, tq), jnp.float32),     # running max (log2 units)
                pltpu.VMEM((hb, 1, tq), jnp.float32),     # running denominator
                pltpu.VMEM((hb, chp, tq), jnp.float32),   # output accumulator
            ],
        ),
        compiler_params=pltpu.CompilerParams(
            dimension_semantics=("parallel", "parallel", "arbitrary"),
            vmem_limit_bytes=vmem_limit,
        ),
    )(q, k, v)

    out = out[:, :ch, :length]
    return out.reshape(bs, n_heads * ch, length)


def _reference_qkv_attention(qkv: jax.Array, n_heads: int) -> jax.Array:
    """Pure-JAX reference mirroring the PyTorch forward exactly."""
    bs, width, length = qkv.shape
    ch = width // (3 * n_heads)
    q, k, v = jnp.split(qkv, 3, axis=1)
    scale = 1.0 / math.sqrt(math.sqrt(ch))
    q = (q * scale).reshape(bs * n_heads, ch, length)
    k = (k * scale).reshape(bs * n_heads, ch, length)
    v = v.reshape(bs * n_heads, ch, length)
    w = jnp.einsum("bct,bcs->bts", q, k)
    w = jax.nn.softmax(w.astype(jnp.float32), axis=-1).astype(w.dtype)
    a = jnp.einsum("bts,bcs->bct", w, v)
    return a.reshape(bs, -1, length)


if __name__ == "__main__":
    # Small deterministic example: N=2, H=2, C=8, T=16  ->  qkv width = 3*H*C = 48
    N, H, C, T = 2, 2, 8, 16
    key = jax.random.PRNGKey(0)
    qkv = jax.random.normal(key, (N, 3 * H * C, T), dtype=jnp.float32)

    out = qkv_attention(qkv, n_heads=H)
    out = jax.block_until_ready(out)

    ref = _reference_qkv_attention(qkv, n_heads=H)
    assert out.shape == (N, H * C, T), out.shape
    assert jnp.allclose(out, ref, atol=1e-3, rtol=1e-3), "mismatch vs reference"

    print("KERNEL_OK")
</pallas_src>

<mosaic_0001>
module attributes {stable_mosaic.version = 11 : i64} {
  func.func @_flash_qkv_kernel(%arg0: i32, %arg1: i32, %arg2: i32, %arg3: memref<2x8x128xf32, #tpu.memory_space<vmem>>, %arg4: memref<2x8x128xf32, #tpu.memory_space<vmem>>, %arg5: memref<2x8x128xf32, #tpu.memory_space<vmem>>, %arg6: memref<2x8x128xf32, #tpu.memory_space<vmem>>, %arg7: memref<2x1x128xf32, #tpu.memory_space<vmem>>, %arg8: memref<2x1x128xf32, #tpu.memory_space<vmem>>, %arg9: memref<2x8x128xf32, #tpu.memory_space<vmem>>) attributes {dimension_semantics = [#tpu.dimension_semantics<parallel>, #tpu.dimension_semantics<parallel>, #tpu.dimension_semantics<arbitrary>], iteration_bounds = array<i64: 2, 1, 1>, scalar_prefetch = 0 : i64, scratch_operands = 3 : i64, tpu.core_type = #tpu.core_type<tc>, window_params = [{transform_indices = @transform_0, window_bounds = array<i64: 2, 8, 128>}, {transform_indices = @transform_1, window_bounds = array<i64: 2, 8, 128>}, {transform_indices = @transform_2, window_bounds = array<i64: 2, 8, 128>}, {transform_indices = @transform_3, window_bounds = array<i64: 2, 8, 128>}]} {
    %c0_i32 = arith.constant 0 : i32
    %0 = arith.cmpi eq, %arg2, %c0_i32 : i32
    %1 = arith.extui %0 : i1 to i32
    %c0_i32_0 = arith.constant 0 : i32
    %2 = arith.cmpi ne, %1, %c0_i32_0 : i32
    scf.if %2 {
      %cst_34 = arith.constant 0xFF800000 : f32
      %42 = vector.broadcast %cst_34 : f32 to vector<2x1x128xf32>
      %c0_35 = arith.constant 0 : index
      %c0_36 = arith.constant 0 : index
      %c0_37 = arith.constant 0 : index
      %43 = vector.load %arg7[%c0_35, %c0_36, %c0_37] : memref<2x1x128xf32, #tpu.memory_space<vmem>>, vector<2x1x128xf32>
      tpu.vector_store %arg7[%c0_35, %c0_36, %c0_37], %42 {strides = array<i32>} : memref<2x1x128xf32, #tpu.memory_space<vmem>>, vector<2x1x128xf32>,
      %cst_38 = arith.constant 0.000000e+00 : f32
      %44 = vector.broadcast %cst_38 : f32 to vector<2x1x128xf32>
      %c0_39 = arith.constant 0 : index
      %c0_40 = arith.constant 0 : index
      %c0_41 = arith.constant 0 : index
      %45 = vector.load %arg8[%c0_39, %c0_40, %c0_41] : memref<2x1x128xf32, #tpu.memory_space<vmem>>, vector<2x1x128xf32>
      tpu.vector_store %arg8[%c0_39, %c0_40, %c0_41], %44 {strides = array<i32>} : memref<2x1x128xf32, #tpu.memory_space<vmem>>, vector<2x1x128xf32>,
      %cst_42 = arith.constant 0.000000e+00 : f32
      %46 = vector.broadcast %cst_42 : f32 to vector<2x8x128xf32>
      %c0_43 = arith.constant 0 : index
      %c0_44 = arith.constant 0 : index
      %c0_45 = arith.constant 0 : index
      %47 = vector.load %arg9[%c0_43, %c0_44, %c0_45] : memref<2x8x128xf32, #tpu.memory_space<vmem>>, vector<2x8x128xf32>
      tpu.vector_store %arg9[%c0_43, %c0_44, %c0_45], %46 {strides = array<i32>} : memref<2x8x128xf32, #tpu.memory_space<vmem>>, vector<2x8x128xf32>,
    } else {
    }
    %c0 = arith.constant 0 : index
    %c0_1 = arith.constant 0 : index
    %c0_2 = arith.constant 0 : index
    %3 = vector.load %arg3[%c0, %c0_1, %c0_2] : memref<2x8x128xf32, #tpu.memory_space<vmem>>, vector<2x8x128xf32>
    %cst = arith.constant 0.510069728 : f32
    %4 = vector.broadcast %cst : f32 to vector<2x8x128xf32>
    %5 = arith.mulf %3, %4 : vector<2x8x128xf32>
    %c0_3 = arith.constant 0 : index
    %c0_4 = arith.constant 0 : index
    %c0_5 = arith.constant 0 : index
    %6 = vector.load %arg4[%c0_3, %c0_4, %c0_5] : memref<2x8x128xf32, #tpu.memory_space<vmem>>, vector<2x8x128xf32>
    %c0_6 = arith.constant 0 : index
    %c0_7 = arith.constant 0 : index
    %c0_8 = arith.constant 0 : index
    %7 = vector.load %arg5[%c0_6, %c0_7, %c0_8] : memref<2x8x128xf32, #tpu.memory_space<vmem>>, vector<2x8x128xf32>
    %cst_9 = arith.constant dense<0.000000e+00> : vector<2x128x128xf32>
    %8 = tpu.matmul %6, %5, %cst_9 {dimension_numbers = #tpu.dot_dimension_numbers<[1], [1], [2], [2], [0, 0, 0, 2, 1, 2], [0], [0]>} : vector<2x8x128xf32>, vector<2x8x128xf32>, vector<2x128x128xf32> -> vector<2x128x128xf32>
    %c128_i32 = arith.constant 128 : i32
    %9 = arith.muli %arg2, %c128_i32 : i32
    %10 = tpu.iota {dimensions = array<i32: 1>} : vector<2x128x128xi32>
    %11 = vector.broadcast %9 : i32 to vector<2x128x128xi32>
    %12 = arith.addi %11, %10 : vector<2x128x128xi32>
    %c16_i32 = arith.constant 16 : i32
    %13 = vector.broadcast %c16_i32 : i32 to vector<2x128x128xi32>
    %14 = arith.cmpi slt, %12, %13 : vector<2x128x128xi32>
    %cst_10 = arith.constant 0xFF800000 : f32
    %15 = vector.broadcast %cst_10 : f32 to vector<2x128x128xf32>
    %16 = arith.select %14, %8, %15 : vector<2x128x128xi1>, vector<2x128x128xf32>
    %c0_11 = arith.constant 0 : index
    %c0_12 = arith.constant 0 : index
    %c0_13 = arith.constant 0 : index
    %17 = vector.load %arg7[%c0_11, %c0_12, %c0_13] : memref<2x1x128xf32, #tpu.memory_space<vmem>>, vector<2x1x128xf32>
    %cst_14 = arith.constant dense<0xFF800000> : vector<2x128xf32>
    %18 = vector.multi_reduction <maximumf>, %16, %cst_14 [1] : vector<2x128x128xf32> to vector<2x128xf32>
    %19 = vector.shape_cast %18 : vector<2x128xf32> to vector<2x1x128xf32>
    %20 = arith.maximumf %17, %19 : vector<2x1x128xf32>
    %21 = arith.subf %17, %20 : vector<2x1x128xf32>
    %22 = math.exp2 %21 : vector<2x1x128xf32>
    %23 = vector.broadcast %20 : vector<2x1x128xf32> to vector<2x128x128xf32>
    %24 = arith.subf %16, %23 : vector<2x128x128xf32>
    %25 = math.exp2 %24 : vector<2x128x128xf32>
    %c0_15 = arith.constant 0 : index
    %c0_16 = arith.constant 0 : index
    %c0_17 = arith.constant 0 : index
    %26 = vector.load %arg8[%c0_15, %c0_16, %c0_17] : memref<2x1x128xf32, #tpu.memory_space<vmem>>, vector<2x1x128xf32>
    %27 = arith.mulf %22, %26 : vector<2x1x128xf32>
    %cst_18 = arith.constant dense<0.000000e+00> : vector<2x128xf32>
    %28 = vector.multi_reduction <add>, %25, %cst_18 [1] : vector<2x128x128xf32> to vector<2x128xf32>
    %29 = vector.shape_cast %28 : vector<2x128xf32> to vector<2x1x128xf32>
    %30 = arith.addf %27, %29 : vector<2x1x128xf32>
    %c0_19 = arith.constant 0 : index
    %c0_20 = arith.constant 0 : index
    %c0_21 = arith.constant 0 : index
    %31 = vector.load %arg8[%c0_19, %c0_20, %c0_21] : memref<2x1x128xf32, #tpu.memory_space<vmem>>, vector<2x1x128xf32>
    tpu.vector_store %arg8[%c0_19, %c0_20, %c0_21], %30 {strides = array<i32>} : memref<2x1x128xf32, #tpu.memory_space<vmem>>, vector<2x1x128xf32>,
    %cst_22 = arith.constant dense<0.000000e+00> : vector<2x8x128xf32>
    %32 = tpu.matmul %7, %25, %cst_22 {dimension_numbers = #tpu.dot_dimension_numbers<[2], [1], [1], [2], [0, 0, 0, 1, 1, 2], [0], [0]>} : vector<2x8x128xf32>, vector<2x128x128xf32>, vector<2x8x128xf32> -> vector<2x8x128xf32>
    %c0_23 = arith.constant 0 : index
    %c0_24 = arith.constant 0 : index
    %c0_25 = arith.constant 0 : index
    %33 = vector.load %arg9[%c0_23, %c0_24, %c0_25] : memref<2x8x128xf32, #tpu.memory_space<vmem>>, vector<2x8x128xf32>
    %34 = vector.broadcast %22 : vector<2x1x128xf32> to vector<2x8x128xf32>
    %35 = arith.mulf %34, %33 : vector<2x8x128xf32>
    %36 = arith.addf %35, %32 : vector<2x8x128xf32>
    %c0_26 = arith.constant 0 : index
    %c0_27 = arith.constant 0 : index
    %c0_28 = arith.constant 0 : index
    %37 = vector.load %arg9[%c0_26, %c0_27, %c0_28] : memref<2x8x128xf32, #tpu.memory_space<vmem>>, vector<2x8x128xf32>
    tpu.vector_store %arg9[%c0_26, %c0_27, %c0_28], %36 {strides = array<i32>} : memref<2x8x128xf32, #tpu.memory_space<vmem>>, vector<2x8x128xf32>,
    %c0_29 = arith.constant 0 : index
    %c0_30 = arith.constant 0 : index
    %c0_31 = arith.constant 0 : index
    %38 = vector.load %arg7[%c0_29, %c0_30, %c0_31] : memref<2x1x128xf32, #tpu.memory_space<vmem>>, vector<2x1x128xf32>
    tpu.vector_store %arg7[%c0_29, %c0_30, %c0_31], %20 {strides = array<i32>} : memref<2x1x128xf32, #tpu.memory_space<vmem>>, vector<2x1x128xf32>,
    %c0_i32_32 = arith.constant 0 : i32
    %39 = arith.cmpi eq, %arg2, %c0_i32_32 : i32
    %40 = arith.extui %39 : i1 to i32
    %c0_i32_33 = arith.constant 0 : i32
    %41 = arith.cmpi ne, %40, %c0_i32_33 : i32
    scf.if %41 {
      %c0_34 = arith.constant 0 : index
      %c0_35 = arith.constant 0 : index
      %c0_36 = arith.constant 0 : index
      %42 = vector.load %arg8[%c0_34, %c0_35, %c0_36] : memref<2x1x128xf32, #tpu.memory_space<vmem>>, vector<2x1x128xf32>
      %cst_37 = arith.constant 1.000000e+00 : f32
      %43 = vector.broadcast %cst_37 : f32 to vector<2x1x128xf32>
      %44 = arith.divf %43, %42 : vector<2x1x128xf32>
      %c0_38 = arith.constant 0 : index
      %c0_39 = arith.constant 0 : index
      %c0_40 = arith.constant 0 : index
      %45 = vector.load %arg9[%c0_38, %c0_39, %c0_40] : memref<2x8x128xf32, #tpu.memory_space<vmem>>, vector<2x8x128xf32>
      %46 = vector.broadcast %44 : vector<2x1x128xf32> to vector<2x8x128xf32>
      %47 = arith.mulf %45, %46 : vector<2x8x128xf32>
      %c0_41 = arith.constant 0 : index
      %c0_42 = arith.constant 0 : index
      %c0_43 = arith.constant 0 : index
      %48 = vector.load %arg6[%c0_41, %c0_42, %c0_43] : memref<2x8x128xf32, #tpu.memory_space<vmem>>, vector<2x8x128xf32>
      tpu.vector_store %arg6[%c0_41, %c0_42, %c0_43], %47 {strides = array<i32>} : memref<2x8x128xf32, #tpu.memory_space<vmem>>, vector<2x8x128xf32>,
    } else {
    }
    return
  }
  func.func @transform_0(%arg0: i32, %arg1: i32, %arg2: i32) -> (i32, i32, i32) {
    %c0_i32 = arith.constant 0 : i32
    %c0_i32_0 = arith.constant 0 : i32
    return %arg0, %c0_i32, %arg1 : i32, i32, i32
  }
  func.func @transform_1(%arg0: i32, %arg1: i32, %arg2: i32) -> (i32, i32, i32) {
    %c0_i32 = arith.constant 0 : i32
    %c0_i32_0 = arith.constant 0 : i32
    return %arg0, %c0_i32, %arg2 : i32, i32, i32
  }
  func.func @transform_2(%arg0: i32, %arg1: i32, %arg2: i32) -> (i32, i32, i32) {
    %c0_i32 = arith.constant 0 : i32
    %c0_i32_0 = arith.constant 0 : i32
    return %arg0, %c0_i32, %arg2 : i32, i32, i32
  }
  func.func @transform_3(%arg0: i32, %arg1: i32, %arg2: i32) -> (i32, i32, i32) {
    %c0_i32 = arith.constant 0 : i32
    %c0_i32_0 = arith.constant 0 : i32
    return %arg0, %c0_i32, %arg1 : i32, i32, i32
  }
}

</mosaic_0001>

<llo_original>
// kernel: tpu_custom_call.1
$region0: #{tpu_custom_call.1}
  #allocation0 [shape = 'u32[]', space=smem, size = 0x4, offset = 0x4, fixed_abs, tag = 'smem constant byte address 0x4 - core index']
  #allocation1 [shape = 'u32[144,128]{1,0:T(1,128)}', space=vmem, size = 0x12000, scoped, tag = 'internal scratch']
  #allocation2 [shape = 'f32[2,1,128]{2,1,0:T(1,128)}', space=vmem, size = 0x400, scoped, tag = 'scratch operand']
  #allocation3 [shape = 'f32[2,1,128]{2,1,0:T(1,128)}', space=vmem, size = 0x400, scoped, tag = 'scratch operand']
  #allocation4 [shape = 'f32[2,8,128]{2,1,0:T(8,128)}', space=vmem, size = 0x2000, scoped, tag = 'scratch operand']
  %s0 = inlined_call_operand.hbm [shape: f32[4,8,128], index: 0, kind: input, shape index: {}]
  %s1 = inlined_call_operand.hbm [shape: f32[4,8,128], index: 1, kind: input, shape index: {}]
  %s2 = inlined_call_operand.hbm [shape: f32[4,8,128], index: 2, kind: input, shape index: {}]
  %s3 = inlined_call_operand.hbm [shape: f32[4,8,128], index: 3, kind: output, shape index: {}]
  %s4 = sld [smem:[#allocation0]]
  $region65: #{tpu_custom_call.1} parent=0
    _
  %s6 = ssub.s32 1, %s4
  %s7 = scalar_select 0, %s6, %s4
  $region1: #{tpu_custom_call.1} parent=0
    #allocation5 [shape = 'u8[16384]{0}', space=vmem, size = 0x4000, scoped, tag = 'input window, operand 0']
    #allocation6 [shape = 's32[2]{0}', space=sflag, size = 0x8, scoped, tag = 'scoped memory for tpu_custom_call.1']
    #allocation7 [shape = 's32[2]{0}', space=sflag, size = 0x8, scoped, tag = 'scoped memory for tpu_custom_call.1']
    #allocation8 [shape = 'u8[16384]{0}', space=vmem, size = 0x4000, scoped, tag = 'input window, operand 1']
    #allocation9 [shape = 's32[2]{0}', space=sflag, size = 0x8, scoped, tag = 'scoped memory for tpu_custom_call.1']
    #allocation10 [shape = 'u8[16384]{0}', space=vmem, size = 0x4000, scoped, tag = 'input window, operand 2']
    #allocation11 [shape = 'u8[16384]{0}', space=vmem, size = 0x4000, scoped, tag = 'output window, operand 0']
    %8 = vsyncpa [#allocation6], 0
    %s9 = scalar_lea.sflag [#allocation6], 1
    %10 = vsyncpa %s9, 0
    %11 = vsyncpa [#allocation9], 0
    %s12 = scalar_lea.sflag [#allocation9], 1
    %13 = vsyncpa %s12, 0
    %14 = vsyncpa [#allocation7], 0
    %s15 = scalar_lea.sflag [#allocation7], 1
    %16 = vsyncpa %s15, 0
    loop: start=0, step=1, limit=4
    $region2: #{tpu_custom_call.1} parent=1 // loop_pre_header
      _
    $region3: #{tpu_custom_call.1} parent=1 // loop_header
      %s18 = sphi 0, %s22
      %p19 = scmp.ge.s32.totalorder %s18, 4
      %s25 = sphi 0, %s44
      %s26 = sphi 0, %s40
      %s27 = sphi 0, %s36
      %s28 = sphi 0, %s25
      %s29 = sphi 0, %s26
      %s30 = sphi 0, %s27
      %s31 = sphi 0, %s28
      %s32 = sphi 0, %s29
      %s33 = sphi 0, %s30
      %s49 = sphi 0, %s51
      %s52 = sphi 0, %s49
      %s53 = sphi 0, %s52
      %s69 = sphi 0, %s53
      %s77 = sphi 0, %s79
      %s80 = sphi 0, %s77
      %s81 = sphi 0, %s80
      %s97 = sphi 0, %s81
      %s105 = sphi 0, %s107
      %s108 = sphi 0, %s105
      %s109 = sphi 0, %s108
      %s125 = sphi 0, %s109
      %s133 = sphi 0, %s135
      %s136 = sphi 0, %s133
      %s137 = sphi 0, %s136
      %s153 = sphi 0, %s137
    $region4: #{tpu_custom_call.1} parent=1 // loop_header_branch
      %21 = sbr.rel (%p19) target = $region8
    $region5: #{tpu_custom_call.1} parent=1 // loop_body
      %s23 = ssub.s32 %s18, 1
      %s24 = ssub.s32 %s18, 2
      %s34 = sadd.s32 1, %s27
      %p35 = scmp.ge.s32.totalorder %s34, 1
      %s36 = scalar_select %p35, 0, %s34
      %s37 = sadd.s32 1, %s26
      %s38 = scalar_select %p35, %s37, %s26
      %p39 = scmp.ge.s32.totalorder %s38, 1
      %s40 = scalar_select %p39, 0, %s38
      %s41 = sadd.s32 1, %s25
      %s42 = scalar_select %p39, %s41, %s25
      %p43 = scmp.ge.s32.totalorder %s42, 2
      %s44 = scalar_select %p43, 0, %s42
      %s45 = ssub.s32 %s25, %s44
      %s46 = ssub.s32 %s26, %s40
      %s47 = sor.u32 %s45, %s46
      %p48 = scmp.eq.s32.totalorder %s47, 0
      %s50 = sadd.s32 %s49, 1
      %s51 = scalar_select %p48, %s49, %s50
      %p54 = pneg %p48
      %p55 = scmp.eq.s32.totalorder %s18, 1
      %p56 = por %p54, %p55
      %p57 = scmp.ne.s32.totalorder %s49, %s52
      %p58 = scmp.eq.s32.totalorder %s18, 0
      %p59 = por %p57, %p58
      %p60 = scmp.ne.s32.totalorder %s49, %s52
      %p61 = scmp.eq.s32.totalorder %s23, 1
      %p62 = por %p60, %p61
      %p63 = scmp.ne.s32.totalorder %s52, %s53
      %p64 = scmp.eq.s32.totalorder %s23, 0
      %p65 = por %p63, %p64
      %p66 = scmp.ne.s32.totalorder %s52, %s53
      %p67 = scmp.eq.s32.totalorder %s24, 1
      %p68 = por %p66, %p67
      %p70 = scmp.ne.s32.totalorder %s53, %s69
      %p71 = scmp.eq.s32.totalorder %s24, 0
      %p72 = por %p70, %p71
      %s73 = ssub.s32 %s25, %s44
      %s74 = ssub.s32 %s27, %s36
      %s75 = sor.u32 %s73, %s74
      %p76 = scmp.eq.s32.totalorder %s75, 0
      %s78 = sadd.s32 %s77, 1
      %s79 = scalar_select %p76, %s77, %s78
      %p82 = pneg %p76
      %p83 = scmp.eq.s32.totalorder %s18, 1
      %p84 = por %p82, %p83
      %p85 = scmp.ne.s32.totalorder %s77, %s80
      %p86 = scmp.eq.s32.totalorder %s18, 0
      %p87 = por %p85, %p86
      %p88 = scmp.ne.s32.totalorder %s77, %s80
      %p89 = scmp.eq.s32.totalorder %s23, 1
      %p90 = por %p88, %p89
      %p91 = scmp.ne.s32.totalorder %s80, %s81
      %p92 = scmp.eq.s32.totalorder %s23, 0
      %p93 = por %p91, %p92
      %p94 = scmp.ne.s32.totalorder %s80, %s81
      %p95 = scmp.eq.s32.totalorder %s24, 1
      %p96 = por %p94, %p95
      %p98 = scmp.ne.s32.totalorder %s81, %s97
      %p99 = scmp.eq.s32.totalorder %s24, 0
      %p100 = por %p98, %p99
      %s101 = ssub.s32 %s25, %s44
      %s102 = ssub.s32 %s27, %s36
      %s103 = sor.u32 %s101, %s102
      %p104 = scmp.eq.s32.totalorder %s103, 0
      %s106 = sadd.s32 %s105, 1
      %s107 = scalar_select %p104, %s105, %s106
      %p110 = pneg %p104
      %p111 = scmp.eq.s32.totalorder %s18, 1
      %p112 = por %p110, %p111
      %p113 = scmp.ne.s32.totalorder %s105, %s108
      %p114 = scmp.eq.s32.totalorder %s18, 0
      %p115 = por %p113, %p114
      %p116 = scmp.ne.s32.totalorder %s105, %s108
      %p117 = scmp.eq.s32.totalorder %s23, 1
      %p118 = por %p116, %p117
      %p119 = scmp.ne.s32.totalorder %s108, %s109
      %p120 = scmp.eq.s32.totalorder %s23, 0
      %p121 = por %p119, %p120
      %p122 = scmp.ne.s32.totalorder %s108, %s109
      %p123 = scmp.eq.s32.totalorder %s24, 1
      %p124 = por %p122, %p123
      %p126 = scmp.ne.s32.totalorder %s109, %s125
      %p127 = scmp.eq.s32.totalorder %s24, 0
      %p128 = por %p126, %p127
      %s129 = ssub.s32 %s25, %s44
      %s130 = ssub.s32 %s26, %s40
      %s131 = sor.u32 %s129, %s130
      %p132 = scmp.eq.s32.totalorder %s131, 0
      %s134 = sadd.s32 %s133, 1
      %s135 = scalar_select %p132, %s133, %s134
      %p138 = pneg %p132
      %p139 = scmp.eq.s32.totalorder %s18, 1
      %p140 = por %p138, %p139
      %p141 = scmp.ne.s32.totalorder %s133, %s136
      %p142 = scmp.eq.s32.totalorder %s18, 0
      %p143 = por %p141, %p142
      %p144 = scmp.ne.s32.totalorder %s133, %s136
      %p145 = scmp.eq.s32.totalorder %s23, 1
      %p146 = por %p144, %p145
      %p147 = scmp.ne.s32.totalorder %s136, %s137
      %p148 = scmp.eq.s32.totalorder %s23, 0
      %p149 = por %p147, %p148
      %p150 = scmp.ne.s32.totalorder %s136, %s137
      %p151 = scmp.eq.s32.totalorder %s24, 1
      %p152 = por %p150, %p151
      %p154 = scmp.ne.s32.totalorder %s137, %s153
      %p155 = scmp.eq.s32.totalorder %s24, 0
      %p156 = por %p154, %p155
      %p157 = scmp.le.s32.totalorder 1, %s18
      %p158 = scmp.lt.s32.totalorder %s18, 3
      %p159 = pnand %p157, %p158
      %p160 = pneg %p159
      // Predicated region
      $region9: #{tpu_custom_call.1} parent=5 // pred_check
        _
      $region10: #{tpu_custom_call.1} parent=5 // pred_check_branch
        %162 = sbr.rel (%p159) target = $region12
      $region11: #{tpu_custom_call.1} parent=5 // pred_region
        %s163 = ssub.s32 %s18, 1
      $region12: #{tpu_custom_call.1} parent=5 // pred_fallthru
        _
      %p164 = scmp.lt.s32.totalorder %s18, 2
      // Predicated region
      $region13: #{tpu_custom_call.1} parent=5 // pred_check
        %p165 = pneg %p164
      $region14: #{tpu_custom_call.1} parent=5 // pred_check_branch
        %167 = sbr.rel (%p165) target = $region16
      $region15: #{tpu_custom_call.1} parent=5 // pred_region
        // Predicated region
        $region17: #{tpu_custom_call.1} parent=15 // pred_check
          %p168 = pneg %p59
        $region18: #{tpu_custom_call.1} parent=15 // pred_check_branch
          %170 = sbr.rel (%p168) target = $region20
        $region19: #{tpu_custom_call.1} parent=15 // pred_region
          %s171 = sand.u32 %s49, 1
          %s172 = scalar_lea.sflag [#allocation6], %s171
          %s173 = sand.u32 %s49, 1
          %s174 = smul.addr %s173, 16
          %s175 = scalar_lea.vmem [#allocation5], %s174
          %s176 = smul.u32 2, %s25
          %s178 = ssub.s32 256, 256
          %179 = vsyncadd %s172, %s178
          %s180 = sadd.s32 %s26, %s176
          %s181 = smul.addr %s180, 128
          %s182 = scalar_lea.hbm %s0, %s181
          %s183 = sshll.u32 %s175, 4
          %s184 = int_to_ptr.vmem [resolvable:$true] %s183
          %189 = dma.hbm_to_vmem [thread:$0]  %s182, 256, %s184, %s172, 128, 128, 8
        $region20: #{tpu_custom_call.1} parent=15 // pred_fallthru
          _
        // Predicated region
        $region21: #{tpu_custom_call.1} parent=15 // pred_check
          %p190 = pneg %p87
        $region22: #{tpu_custom_call.1} parent=15 // pred_check_branch
          %192 = sbr.rel (%p190) target = $region24
        $region23: #{tpu_custom_call.1} parent=15 // pred_region
          %s193 = sand.u32 %s18, 1
          %s194 = scalar_lea.sflag [#allocation9], %s193
          %s195 = sand.u32 %s77, 1
          %s196 = smul.addr %s195, 16
          %s197 = scalar_lea.vmem [#allocation8], %s196
          %s198 = smul.u32 2, %s25
          %s200 = ssub.s32 256, 256
          %201 = vsyncadd %s194, %s200
          %s202 = sadd.s32 %s27, %s198
          %s203 = smul.addr %s202, 128
          %s204 = scalar_lea.hbm %s1, %s203
          %s205 = sshll.u32 %s197, 4
          %s206 = int_to_ptr.vmem [resolvable:$true] %s205
          %211 = dma.hbm_to_vmem [thread:$0]  %s204, 256, %s206, %s194, 128, 128, 8
        $region24: #{tpu_custom_call.1} parent=15 // pred_fallthru
          _
        // Predicated region
        $region25: #{tpu_custom_call.1} parent=15 // pred_check
          %p212 = pneg %p115
        $region26: #{tpu_custom_call.1} parent=15 // pred_check_branch
          %214 = sbr.rel (%p212) target = $region28
        $region27: #{tpu_custom_call.1} parent=15 // pred_region
          %s215 = sand.u32 %s18, 1
          %s216 = scalar_lea.sflag [#allocation9], %s215
          %s217 = sand.u32 %s105, 1
          %s218 = smul.addr %s217, 16
          %s219 = scalar_lea.vmem [#allocation10], %s218
          %s220 = smul.u32 2, %s25
          %s222 = ssub.s32 256, 256
          %223 = vsyncadd %s216, %s222
          %s224 = sadd.s32 %s27, %s220
          %s225 = smul.addr %s224, 128
          %s226 = scalar_lea.hbm %s2, %s225
          %s227 = sshll.u32 %s219, 4
          %s228 = int_to_ptr.vmem [resolvable:$true] %s227
          %233 = dma.hbm_to_vmem [thread:$0]  %s226, 256, %s228, %s216, 128, 128, 8
        $region28: #{tpu_custom_call.1} parent=15 // pred_fallthru
          _
      $region16: #{tpu_custom_call.1} parent=5 // pred_fallthru
        _
      %p234 = scmp.le.s32.totalorder 1, %s18
      %p235 = scmp.lt.s32.totalorder %s18, 3
      %p236 = pnand %p234, %p235
      %p237 = pneg %p236
      // Predicated region
      $region29: #{tpu_custom_call.1} parent=5 // pred_check
        _
      $region30: #{tpu_custom_call.1} parent=5 // pred_check_branch
        %239 = sbr.rel (%p236) target = $region32
      $region31: #{tpu_custom_call.1} parent=5 // pred_region
        %s240 = ssub.s32 %s18, 1
        %s241 = sand.u32 %s52, 1
        %s242 = scalar_lea.sflag [#allocation6], %s241
        %s243 = sand.u32 %s52, 1
        %s244 = smul.addr %s243, 16
        %s245 = scalar_lea.vmem [#allocation5], %s244
        // Predicated region
        $region33: #{tpu_custom_call.1} parent=31 // pred_check
          %p246 = pneg %p65
        $region34: #{tpu_custom_call.1} parent=31 // pred_check_branch
          %248 = sbr.rel (%p246) target = $region36
        $region35: #{tpu_custom_call.1} parent=31 // pred_region
          %249 = dma.done %s242, 256
        $region36: #{tpu_custom_call.1} parent=31 // pred_fallthru
          _
        %s250 = sand.u32 %s23, 1
        %s251 = scalar_lea.sflag [#allocation9], %s250
        %s252 = sand.u32 %s80, 1
        %s253 = smul.addr %s252, 16
        %s254 = scalar_lea.vmem [#allocation8], %s253
        // Predicated region
        $region37: #{tpu_custom_call.1} parent=31 // pred_check
          %p255 = pneg %p93
        $region38: #{tpu_custom_call.1} parent=31 // pred_check_branch
          %257 = sbr.rel (%p255) target = $region40
        $region39: #{tpu_custom_call.1} parent=31 // pred_region
          %258 = dma.done %s251, 256
        $region40: #{tpu_custom_call.1} parent=31 // pred_fallthru
          _
        %s259 = sand.u32 %s23, 1
        %s260 = scalar_lea.sflag [#allocation9], %s259
        %s261 = sand.u32 %s108, 1
        %s262 = smul.addr %s261, 16
        %s263 = scalar_lea.vmem [#allocation10], %s262
        // Predicated region
        $region41: #{tpu_custom_call.1} parent=31 // pred_check
          %p264 = pneg %p121
        $region42: #{tpu_custom_call.1} parent=31 // pred_check_branch
          %266 = sbr.rel (%p264) target = $region44
        $region43: #{tpu_custom_call.1} parent=31 // pred_region
          %267 = dma.done %s260, 256
        $region44: #{tpu_custom_call.1} parent=31 // pred_fallthru
          _
        %s268 = sand.u32 %s52, 1
        %s269 = scalar_lea.sflag [#allocation6], %s268
        %s270 = sand.u32 %s52, 1
        %s271 = smul.addr %s270, 16
        %s272 = scalar_lea.vmem [#allocation5], %s271
        %p273 = pneg %p65
        %p274 = pneg %p62
        %s275 = sand.u32 %s23, 1
        %s276 = scalar_lea.sflag [#allocation9], %s275
        %s277 = sand.u32 %s80, 1
        %s278 = smul.addr %s277, 16
        %s279 = scalar_lea.vmem [#allocation8], %s278
        %p280 = pneg %p93
        %p281 = pneg %p90
        %s282 = sand.u32 %s23, 1
        %s283 = scalar_lea.sflag [#allocation9], %s282
        %s284 = sand.u32 %s108, 1
        %s285 = smul.addr %s284, 16
        %s286 = scalar_lea.vmem [#allocation10], %s285
        %p287 = pneg %p121
        %p288 = pneg %p118
        %p289 = pneg %p149
        %p290 = pneg %p146
        %s291 = sand.u32 %s136, 1
        %s292 = scalar_lea.sflag [#allocation7], %s291
        %s293 = sand.u32 %s136, 1
        %s294 = smul.addr %s293, 16
        %s295 = scalar_lea.vmem [#allocation11], %s294
        %s296 = smul.u32 2, %s28
        %s297 = smul.u32 2, %s28
        %s298 = smul.u32 2, %s28
        %s299 = smul.u32 2, %s28
        %p300 = scmp.eq.s32.totalorder %s30, 0
        // Predicated region
        $region45: #{tpu_custom_call.1} parent=31 // pred_check
          %p301 = pneg %p300
        $region46: #{tpu_custom_call.1} parent=31 // pred_check_branch
          %303 = sbr.rel (%p301) target = $region48
        $region47: #{tpu_custom_call.1} parent=31 // pred_region
          %304 = vst [vmem:[#allocation2] sm:$0x1] -inf
          %305 = vst [vmem:[#allocation2 + $0x1] sm:$0x1] -inf
          %306 = vst [vmem:[#allocation3] sm:$0x1] 0.0
          %307 = vst [vmem:[#allocation3 + $0x1] sm:$0x1] 0.0
          %308 = vst [vmem:[#allocation4] sm:$0xff] 0.0
          %309 = vst [vmem:[#allocation4 + $0x8] sm:$0xff] 0.0
        $region48: #{tpu_custom_call.1} parent=31 // pred_fallthru
          _
        %v310 = vld [vmem:[%s245] sm:$0xff]
        %v311 = vld [vmem:[%s245 + $0x8] sm:$0xff]
        %v312 = vmul.f32 %v310, 0.5100697
        %v313 = vmul.f32 %v311, 0.5100697
        %v314 = vld [vmem:[%s254] sm:$0xff]
        %v315 = vld [vmem:[%s254 + $0x8] sm:$0xff]
        %v316 = vld [vmem:[%s263] sm:$0xff]
        %v317 = vld [vmem:[%s263 + $0x8] sm:$0xff]
        %318 = vxpose.xlu0.b32.start [1/16] %v314, 128
        %319 = vxpose.xlu0.b32.cont [2/16] 0.0, 128
        %320 = vxpose.xlu0.b32.cont [3/16] 0.0, 128
        %321 = vxpose.xlu0.b32.cont [4/16] 0.0, 128
        %322 = vxpose.xlu0.b32.cont [5/16] 0.0, 128
        %323 = vxpose.xlu0.b32.cont [6/16] 0.0, 128
        %324 = vxpose.xlu0.b32.cont [7/16] 0.0, 128
        %325 = vxpose.xlu0.b32.cont [8/16] 0.0, 128
        %326 = vxpose.xlu0.b32.cont [9/16] 0.0, 128
        %327 = vxpose.xlu0.b32.cont [10/16] 0.0, 128
        %328 = vxpose.xlu0.b32.cont [11/16] 0.0, 128
        %329 = vxpose.xlu0.b32.cont [12/16] 0.0, 128
        %330 = vxpose.xlu0.b32.cont [13/16] 0.0, 128
        %331 = vxpose.xlu0.b32.cont [14/16] 0.0, 128
        %332 = vxpose.xlu0.b32.cont [15/16] 0.0, 128
        %333 = vxpose.xlu0.b32.end [16/16] 0.0, 128
        %v334 = vpop.trf.xlu0
        %v335 = vpop.trf.xlu0
        %v336 = vpop.trf.xlu0
        %v337 = vpop.trf.xlu0
        %v338 = vpop.trf.xlu0
        %v339 = vpop.trf.xlu0
        %v340 = vpop.trf.xlu0
        %v341 = vpop.trf.xlu0
        %v342 = vpop.trf.xlu0
        %v343 = vpop.trf.xlu0
        %v344 = vpop.trf.xlu0
        %v345 = vpop.trf.xlu0
        %v346 = vpop.trf.xlu0
        %v347 = vpop.trf.xlu0
        %v348 = vpop.trf.xlu0
        %v349 = vpop.trf.xlu0
        %vm350 = vcmask 64512
        %v352 = vsel %vm350, %v334, 0
        %v355 = vsel %vm350, %v335, 0
        %v358 = vsel %vm350, %v336, 0
        %v361 = vsel %vm350, %v337, 0
        %v364 = vsel %vm350, %v338, 0
        %v367 = vsel %vm350, %v339, 0
        %v370 = vsel %vm350, %v340, 0
        %v373 = vsel %vm350, %v341, 0
        %v376 = vsel %vm350, %v342, 0
        %v379 = vsel %vm350, %v343, 0
        %v382 = vsel %vm350, %v344, 0
        %v385 = vsel %vm350, %v345, 0
        %v388 = vsel %vm350, %v346, 0
        %v391 = vsel %vm350, %v347, 0
        %v394 = vsel %vm350, %v348, 0
        %v397 = vsel %vm350, %v349, 0
        %399 = vmatprep.subr.mxu0 0.0
        %400 = vmatpush1.msra.mxu0 %v312
        %401 = vmatprep.subr.mxu0 0.0
        %402 = vmatpush1.msra.mxu0 0.0
        %403 = vmatprep.subr.mxu0 0.0
        %404 = vmatpush1.msra.mxu0 0.0
        %405 = vmatprep.subr.mxu0 0.0
        %406 = vmatpush1.msra.mxu0 0.0
        %407 = vmatprep.subr.mxu0 0.0
        %408 = vmatpush1.msra.mxu0 0.0
        %409 = vmatprep.subr.mxu0 0.0
        %410 = vmatpush1.msra.mxu0 0.0
        %411 = vmatprep.subr.mxu0 0.0
        %412 = vmatpush1.msra.mxu0 0.0
        %413 = vmatprep.subr.mxu0 0.0
        %414 = vmatpush1.msra.mxu0 0.0
        %415 = vmatprep.subr.mxu0 0.0
        %416 = vmatpush1.msra.mxu0 0.0
        %417 = vmatprep.subr.mxu0 0.0
        %418 = vmatpush1.msra.mxu0 0.0
        %419 = vmatprep.subr.mxu0 0.0
        %420 = vmatpush1.msra.mxu0 0.0
        %421 = vmatprep.subr.mxu0 0.0
        %422 = vmatpush1.msra.mxu0 0.0
        %423 = vmatprep.subr.mxu0 0.0
        %424 = vmatpush1.msra.mxu0 0.0
        %425 = vmatprep.subr.mxu0 0.0
        %426 = vmatpush1.msra.mxu0 0.0
        %427 = vmatprep.subr.mxu0 0.0
        %428 = vmatpush1.msra.mxu0 0.0
        %429 = vmatprep.subr.mxu0 0.0
        %430 = vmatpush1.msra.mxu0 0.0
        %431 = vmatprep.subr.mxu0 0.0
        %432 = vmatpush1.msra.mxu0 0.0
        %433 = vmatprep.subr.mxu0 0.0
        %434 = vmatpush1.msra.mxu0 0.0
        %435 = vmatprep.subr.mxu0 0.0
        %436 = vmatpush1.msra.mxu0 0.0
        %437 = vmatprep.subr.mxu0 0.0
        %438 = vmatpush1.msra.mxu0 0.0
        %439 = vmatprep.subr.mxu0 0.0
        %440 = vmatpush1.msra.mxu0 0.0
        %441 = vmatprep.subr.mxu0 0.0
        %442 = vmatpush1.msra.mxu0 0.0
        %443 = vmatprep.subr.mxu0 0.0
        %444 = vmatpush1.msra.mxu0 0.0
        %445 = vmatprep.subr.mxu0 0.0
        %446 = vmatpush1.msra.mxu0 0.0
        %447 = vmatprep.subr.mxu0 0.0
        %448 = vmatpush1.msra.mxu0 0.0
        %449 = vmatprep.subr.mxu0 0.0
        %450 = vmatpush1.msra.mxu0 0.0
        %451 = vmatprep.subr.mxu0 0.0
        %452 = vmatpush1.msra.mxu0 0.0
        %453 = vmatprep.subr.mxu0 0.0
        %454 = vmatpush1.msra.mxu0 0.0
        %455 = vmatprep.subr.mxu0 0.0
        %456 = vmatpush1.msra.mxu0 0.0
        %457 = vmatprep.subr.mxu0 0.0
        %458 = vmatpush1.msra.mxu0 0.0
        %459 = vmatprep.subr.mxu0 0.0
        %460 = vmatpush1.msra.mxu0 0.0
        %461 = vmatprep.subr.mxu0 0.0
        %462 = vmatpush1.msra.mxu0 0.0
        %463 = vmatprep.mubr.f32.mxu0 0.0
        %464 = vmatmul.mubr.f32.gmra.mrb[0].mxu0 %v352
        %v465 = vpop.f32.mrb[0].mxu0
        %v466 = vadd.f32 0.0, %v465
        %v467 = vpop.f32.mrb[0].mxu0
        %468 = vmatprep.mubr.f32.mxu0 0.0
        %469 = vmatmul.mubr.f32.gmra.mrb[0].mxu0 %v355
        %v470 = vpop.f32.mrb[0].mxu0
        %v471 = vadd.f32 0.0, %v470
        %v472 = vpop.f32.mrb[0].mxu0
        %473 = vmatprep.mubr.f32.mxu0 0.0
        %474 = vmatmul.mubr.f32.gmra.mrb[0].mxu0 %v358
        %v475 = vpop.f32.mrb[0].mxu0
        %v476 = vadd.f32 0.0, %v475
        %v477 = vpop.f32.mrb[0].mxu0
        %478 = vmatprep.mubr.f32.mxu0 0.0
        %479 = vmatmul.mubr.f32.gmra.mrb[0].mxu0 %v361
        %v480 = vpop.f32.mrb[0].mxu0
        %v481 = vadd.f32 0.0, %v480
        %v482 = vpop.f32.mrb[0].mxu0
        %483 = vmatprep.mubr.f32.mxu0 0.0
        %484 = vmatmul.mubr.f32.gmra.mrb[0].mxu0 %v364
        %v485 = vpop.f32.mrb[0].mxu0
        %v486 = vadd.f32 0.0, %v485
        %v487 = vpop.f32.mrb[0].mxu0
        %488 = vmatprep.mubr.f32.mxu0 0.0
        %489 = vmatmul.mubr.f32.gmra.mrb[0].mxu0 %v367
        %v490 = vpop.f32.mrb[0].mxu0
        %v491 = vadd.f32 0.0, %v490
        %v492 = vpop.f32.mrb[0].mxu0
        %493 = vmatprep.mubr.f32.mxu0 0.0
        %494 = vmatmul.mubr.f32.gmra.mrb[0].mxu0 %v370
        %v495 = vpop.f32.mrb[0].mxu0
        %v496 = vadd.f32 0.0, %v495
        %v497 = vpop.f32.mrb[0].mxu0
        %498 = vmatprep.mubr.f32.mxu0 0.0
        %499 = vmatmul.mubr.f32.gmra.mrb[0].mxu0 %v373
        %v500 = vpop.f32.mrb[0].mxu0
        %v501 = vadd.f32 0.0, %v500
        %v502 = vpop.f32.mrb[0].mxu0
        %503 = vmatprep.mubr.f32.mxu0 0.0
        %504 = vmatmul.mubr.f32.gmra.mrb[0].mxu0 %v376
        %v505 = vpop.f32.mrb[0].mxu0
        %v506 = vadd.f32 0.0, %v505
        %v507 = vpop.f32.mrb[0].mxu0
        %508 = vmatprep.mubr.f32.mxu0 0.0
        %509 = vmatmul.mubr.f32.gmra.mrb[0].mxu0 %v379
        %v510 = vpop.f32.mrb[0].mxu0
        %v511 = vadd.f32 0.0, %v510
        %v512 = vpop.f32.mrb[0].mxu0
        %513 = vmatprep.mubr.f32.mxu0 0.0
        %514 = vmatmul.mubr.f32.gmra.mrb[0].mxu0 %v382
        %v515 = vpop.f32.mrb[0].mxu0
        %v516 = vadd.f32 0.0, %v515
        %v517 = vpop.f32.mrb[0].mxu0
        %518 = vmatprep.mubr.f32.mxu0 0.0
        %519 = vmatmul.mubr.f32.gmra.mrb[0].mxu0 %v385
        %v520 = vpop.f32.mrb[0].mxu0
        %v521 = vadd.f32 0.0, %v520
        %v522 = vpop.f32.mrb[0].mxu0
        %523 = vmatprep.mubr.f32.mxu0 0.0
        %524 = vmatmul.mubr.f32.gmra.mrb[0].mxu0 %v388
        %v525 = vpop.f32.mrb[0].mxu0
        %v526 = vadd.f32 0.0, %v525
        %v527 = vpop.f32.mrb[0].mxu0
        %528 = vmatprep.mubr.f32.mxu0 0.0
        %529 = vmatmul.mubr.f32.gmra.mrb[0].mxu0 %v391
        %v530 = vpop.f32.mrb[0].mxu0
        %v531 = vadd.f32 0.0, %v530
        %v532 = vpop.f32.mrb[0].mxu0
        %533 = vmatprep.mubr.f32.mxu0 0.0
        %534 = vmatmul.mubr.f32.gmra.mrb[0].mxu0 %v394
        %v535 = vpop.f32.mrb[0].mxu0
        %v536 = vadd.f32 0.0, %v535
        %v537 = vpop.f32.mrb[0].mxu0
        %538 = vmatprep.mubr.f32.mxu0 0.0
        %539 = vmatmul.mubr.f32.gmra.mrb[0].mxu0 %v397
        %v540 = vpop.f32.mrb[0].mxu0
        %v541 = vadd.f32 0.0, %v540
        %v542 = vpop.f32.mrb[0].mxu0
        %543 = vdwg.mxu0
        %544 = vxpose.xlu0.b32.start [1/16] %v315, 128
        %545 = vxpose.xlu0.b32.cont [2/16] 0.0, 128
        %546 = vxpose.xlu0.b32.cont [3/16] 0.0, 128
        %547 = vxpose.xlu0.b32.cont [4/16] 0.0, 128
        %548 = vxpose.xlu0.b32.cont [5/16] 0.0, 128
        %549 = vxpose.xlu0.b32.cont [6/16] 0.0, 128
        %550 = vxpose.xlu0.b32.cont [7/16] 0.0, 128
        %551 = vxpose.xlu0.b32.cont [8/16] 0.0, 128
        %552 = vxpose.xlu0.b32.cont [9/16] 0.0, 128
        %553 = vxpose.xlu0.b32.cont [10/16] 0.0, 128
        %554 = vxpose.xlu0.b32.cont [11/16] 0.0, 128
        %555 = vxpose.xlu0.b32.cont [12/16] 0.0, 128
        %556 = vxpose.xlu0.b32.cont [13/16] 0.0, 128
        %557 = vxpose.xlu0.b32.cont [14/16] 0.0, 128
        %558 = vxpose.xlu0.b32.cont [15/16] 0.0, 128
        %559 = vxpose.xlu0.b32.end [16/16] 0.0, 128
        %v560 = vpop.trf.xlu0
        %v561 = vpop.trf.xlu0
        %v562 = vpop.trf.xlu0
        %v563 = vpop.trf.xlu0
        %v564 = vpop.trf.xlu0
        %v565 = vpop.trf.xlu0
        %v566 = vpop.trf.xlu0
        %v567 = vpop.trf.xlu0
        %v568 = vpop.trf.xlu0
        %v569 = vpop.trf.xlu0
        %v570 = vpop.trf.xlu0
        %v571 = vpop.trf.xlu0
        %v572 = vpop.trf.xlu0
        %v573 = vpop.trf.xlu0
        %v574 = vpop.trf.xlu0
        %v575 = vpop.trf.xlu0
        %v577 = vsel %vm350, %v560, 0
        %v580 = vsel %vm350, %v561, 0
        %v583 = vsel %vm350, %v562, 0
        %v586 = vsel %vm350, %v563, 0
        %v589 = vsel %vm350, %v564, 0
        %v592 = vsel %vm350, %v565, 0
        %v595 = vsel %vm350, %v566, 0
        %v598 = vsel %vm350, %v567, 0
        %v601 = vsel %vm350, %v568, 0
        %v604 = vsel %vm350, %v569, 0
        %v607 = vsel %vm350, %v570, 0
        %v610 = vsel %vm350, %v571, 0
        %v613 = vsel %vm350, %v572, 0
        %v616 = vsel %vm350, %v573, 0
        %v619 = vsel %vm350, %v574, 0
        %v622 = vsel %vm350, %v575, 0
        %624 = vmatprep.subr.mxu0 0.0
        %625 = vmatpush1.msra.mxu0 %v313
        %626 = vmatprep.subr.mxu0 0.0
        %627 = vmatpush1.msra.mxu0 0.0
        %628 = vmatprep.subr.mxu0 0.0
        %629 = vmatpush1.msra.mxu0 0.0
        %630 = vmatprep.subr.mxu0 0.0
        %631 = vmatpush1.msra.mxu0 0.0
        %632 = vmatprep.subr.mxu0 0.0
        %633 = vmatpush1.msra.mxu0 0.0
        %634 = vmatprep.subr.mxu0 0.0
        %635 = vmatpush1.msra.mxu0 0.0
        %636 = vmatprep.subr.mxu0 0.0
        %637 = vmatpush1.msra.mxu0 0.0
        %638 = vmatprep.subr.mxu0 0.0
        %639 = vmatpush1.msra.mxu0 0.0
        %640 = vmatprep.subr.mxu0 0.0
        %641 = vmatpush1.msra.mxu0 0.0
        %642 = vmatprep.subr.mxu0 0.0
        %643 = vmatpush1.msra.mxu0 0.0
        %644 = vmatprep.subr.mxu0 0.0
        %645 = vmatpush1.msra.mxu0 0.0
        %646 = vmatprep.subr.mxu0 0.0
        %647 = vmatpush1.msra.mxu0 0.0
        %648 = vmatprep.subr.mxu0 0.0
        %649 = vmatpush1.msra.mxu0 0.0
        %650 = vmatprep.subr.mxu0 0.0
        %651 = vmatpush1.msra.mxu0 0.0
        %652 = vmatprep.subr.mxu0 0.0
        %653 = vmatpush1.msra.mxu0 0.0
        %654 = vmatprep.subr.mxu0 0.0
        %655 = vmatpush1.msra.mxu0 0.0
        %656 = vmatprep.subr.mxu0 0.0
        %657 = vmatpush1.msra.mxu0 0.0
        %658 = vmatprep.subr.mxu0 0.0
        %659 = vmatpush1.msra.mxu0 0.0
        %660 = vmatprep.subr.mxu0 0.0
        %661 = vmatpush1.msra.mxu0 0.0
        %662 = vmatprep.subr.mxu0 0.0
        %663 = vmatpush1.msra.mxu0 0.0
        %664 = vmatprep.subr.mxu0 0.0
        %665 = vmatpush1.msra.mxu0 0.0
        %666 = vmatprep.subr.mxu0 0.0
        %667 = vmatpush1.msra.mxu0 0.0
        %668 = vmatprep.subr.mxu0 0.0
        %669 = vmatpush1.msra.mxu0 0.0
        %670 = vmatprep.subr.mxu0 0.0
        %671 = vmatpush1.msra.mxu0 0.0
        %672 = vmatprep.subr.mxu0 0.0
        %673 = vmatpush1.msra.mxu0 0.0
        %674 = vmatprep.subr.mxu0 0.0
        %675 = vmatpush1.msra.mxu0 0.0
        %676 = vmatprep.subr.mxu0 0.0
        %677 = vmatpush1.msra.mxu0 0.0
        %678 = vmatprep.subr.mxu0 0.0
        %679 = vmatpush1.msra.mxu0 0.0
        %680 = vmatprep.subr.mxu0 0.0
        %681 = vmatpush1.msra.mxu0 0.0
        %682 = vmatprep.subr.mxu0 0.0
        %683 = vmatpush1.msra.mxu0 0.0
        %684 = vmatprep.subr.mxu0 0.0
        %685 = vmatpush1.msra.mxu0 0.0
        %686 = vmatprep.subr.mxu0 0.0
        %687 = vmatpush1.msra.mxu0 0.0
        %688 = vmatprep.mubr.f32.mxu0 0.0
        %689 = vmatmul.mubr.f32.gmra.mrb[0].mxu0 %v577
        %v690 = vpop.f32.mrb[0].mxu0
        %v691 = vadd.f32 0.0, %v690
        %v692 = vpop.f32.mrb[0].mxu0
        %693 = vmatprep.mubr.f32.mxu0 0.0
        %694 = vmatmul.mubr.f32.gmra.mrb[0].mxu0 %v580
        %v695 = vpop.f32.mrb[0].mxu0
        %v696 = vadd.f32 0.0, %v695
        %v697 = vpop.f32.mrb[0].mxu0
        %698 = vmatprep.mubr.f32.mxu0 0.0
        %699 = vmatmul.mubr.f32.gmra.mrb[0].mxu0 %v583
        %v700 = vpop.f32.mrb[0].mxu0
        %v701 = vadd.f32 0.0, %v700
        %v702 = vpop.f32.mrb[0].mxu0
        %703 = vmatprep.mubr.f32.mxu0 0.0
        %704 = vmatmul.mubr.f32.gmra.mrb[0].mxu0 %v586
        %v705 = vpop.f32.mrb[0].mxu0
        %v706 = vadd.f32 0.0, %v705
        %v707 = vpop.f32.mrb[0].mxu0
        %708 = vmatprep.mubr.f32.mxu0 0.0
        %709 = vmatmul.mubr.f32.gmra.mrb[0].mxu0 %v589
        %v710 = vpop.f32.mrb[0].mxu0
        %v711 = vadd.f32 0.0, %v710
        %v712 = vpop.f32.mrb[0].mxu0
        %713 = vmatprep.mubr.f32.mxu0 0.0
        %714 = vmatmul.mubr.f32.gmra.mrb[0].mxu0 %v592
        %v715 = vpop.f32.mrb[0].mxu0
        %v716 = vadd.f32 0.0, %v715
        %v717 = vpop.f32.mrb[0].mxu0
        %718 = vmatprep.mubr.f32.mxu0 0.0
        %719 = vmatmul.mubr.f32.gmra.mrb[0].mxu0 %v595
        %v720 = vpop.f32.mrb[0].mxu0
        %v721 = vadd.f32 0.0, %v720
        %v722 = vpop.f32.mrb[0].mxu0
        %723 = vmatprep.mubr.f32.mxu0 0.0
        %724 = vmatmul.mubr.f32.gmra.mrb[0].mxu0 %v598
        %v725 = vpop.f32.mrb[0].mxu0
        %v726 = vadd.f32 0.0, %v725
        %v727 = vpop.f32.mrb[0].mxu0
        %728 = vmatprep.mubr.f32.mxu0 0.0
        %729 = vmatmul.mubr.f32.gmra.mrb[0].mxu0 %v601
        %v730 = vpop.f32.mrb[0].mxu0
        %v731 = vadd.f32 0.0, %v730
        %v732 = vpop.f32.mrb[0].mxu0
        %733 = vmatprep.mubr.f32.mxu0 0.0
        %734 = vmatmul.mubr.f32.gmra.mrb[0].mxu0 %v604
        %v735 = vpop.f32.mrb[0].mxu0
        %v736 = vadd.f32 0.0, %v735
        %v737 = vpop.f32.mrb[0].mxu0
        %738 = vmatprep.mubr.f32.mxu0 0.0
        %739 = vmatmul.mubr.f32.gmra.mrb[0].mxu0 %v607
        %v740 = vpop.f32.mrb[0].mxu0
        %v741 = vadd.f32 0.0, %v740
        %v742 = vpop.f32.mrb[0].mxu0
        %743 = vmatprep.mubr.f32.mxu0 0.0
        %744 = vmatmul.mubr.f32.gmra.mrb[0].mxu0 %v610
        %v745 = vpop.f32.mrb[0].mxu0
        %v746 = vadd.f32 0.0, %v745
        %v747 = vpop.f32.mrb[0].mxu0
        %748 = vmatprep.mubr.f32.mxu0 0.0
        %749 = vmatmul.mubr.f32.gmra.mrb[0].mxu0 %v613
        %v750 = vpop.f32.mrb[0].mxu0
        %v751 = vadd.f32 0.0, %v750
        %v752 = vpop.f32.mrb[0].mxu0
        %753 = vmatprep.mubr.f32.mxu0 0.0
        %754 = vmatmul.mubr.f32.gmra.mrb[0].mxu0 %v616
        %v755 = vpop.f32.mrb[0].mxu0
        %v756 = vadd.f32 0.0, %v755
        %v757 = vpop.f32.mrb[0].mxu0
        %758 = vmatprep.mubr.f32.mxu0 0.0
        %759 = vmatmul.mubr.f32.gmra.mrb[0].mxu0 %v619
        %v760 = vpop.f32.mrb[0].mxu0
        %v761 = vadd.f32 0.0, %v760
        %v762 = vpop.f32.mrb[0].mxu0
        %763 = vmatprep.mubr.f32.mxu0 0.0
        %764 = vmatmul.mubr.f32.gmra.mrb[0].mxu0 %v622
        %v765 = vpop.f32.mrb[0].mxu0
        %v766 = vadd.f32 0.0, %v765
        %v767 = vpop.f32.mrb[0].mxu0
        %768 = vdwg.mxu0
        %s769 = smul.u32 %s30, 128
        %v770 = vlaneseq
        %v771 = vshrl.u32 %v770, 7
        %v772 = vadd.s32 %v771, 8
        %v773 = vadd.s32 %v771, 16
        %v774 = vadd.s32 %v771, 24
        %v775 = vadd.s32 %v771, 32
        %v776 = vadd.s32 %v771, 40
        %v777 = vadd.s32 %v771, 48
        %v778 = vadd.s32 %v771, 56
        %v779 = vadd.s32 %v771, 64
        %v780 = vadd.s32 %v771, 72
        %v781 = vadd.s32 %v771, 80
        %v782 = vadd.s32 %v771, 88
        %v783 = vadd.s32 %v771, 96
        %v784 = vadd.s32 %v771, 104
        %v785 = vadd.s32 %v771, 112
        %v786 = vadd.s32 %v771, 120
        %v787 = vstv %s769
        %v788 = vadd.s32 %v787, %v771
        %v789 = vadd.s32 %v787, %v772
        %v790 = vadd.s32 %v787, %v773
        %v791 = vadd.s32 %v787, %v774
        %v792 = vadd.s32 %v787, %v775
        %v793 = vadd.s32 %v787, %v776
        %v794 = vadd.s32 %v787, %v777
        %v795 = vadd.s32 %v787, %v778
        %v796 = vadd.s32 %v787, %v779
        %v797 = vadd.s32 %v787, %v780
        %v798 = vadd.s32 %v787, %v781
        %v799 = vadd.s32 %v787, %v782
        %v800 = vadd.s32 %v787, %v783
        %v801 = vadd.s32 %v787, %v784
        %v802 = vadd.s32 %v787, %v785
        %v803 = vadd.s32 %v787, %v786
        %vm804 = vcmp.lt.s32.totalorder %v788, 16
        %vm805 = vcmp.lt.s32.totalorder %v789, 16
        %vm806 = vcmp.lt.s32.totalorder %v790, 16
        %vm807 = vcmp.lt.s32.totalorder %v791, 16
        %vm808 = vcmp.lt.s32.totalorder %v792, 16
        %vm809 = vcmp.lt.s32.totalorder %v793, 16
        %vm810 = vcmp.lt.s32.totalorder %v794, 16
        %vm811 = vcmp.lt.s32.totalorder %v795, 16
        %vm812 = vcmp.lt.s32.totalorder %v796, 16
        %vm813 = vcmp.lt.s32.totalorder %v797, 16
        %vm814 = vcmp.lt.s32.totalorder %v798, 16
        %vm815 = vcmp.lt.s32.totalorder %v799, 16
        %vm816 = vcmp.lt.s32.totalorder %v800, 16
        %vm817 = vcmp.lt.s32.totalorder %v801, 16
        %vm818 = vcmp.lt.s32.totalorder %v802, 16
        %vm819 = vcmp.lt.s32.totalorder %v803, 16
        %v820 = vsel %vm804, %v466, -inf
        %v821 = vsel %vm805, %v471, -inf
        %v822 = vsel %vm806, %v476, -inf
        %v823 = vsel %vm807, %v481, -inf
        %v824 = vsel %vm808, %v486, -inf
        %v825 = vsel %vm809, %v491, -inf
        %v826 = vsel %vm810, %v496, -inf
        %v827 = vsel %vm811, %v501, -inf
        %v828 = vsel %vm812, %v506, -inf
        %v829 = vsel %vm813, %v511, -inf
        %v830 = vsel %vm814, %v516, -inf
        %v831 = vsel %vm815, %v521, -inf
        %v832 = vsel %vm816, %v526, -inf
        %v833 = vsel %vm817, %v531, -inf
        %v834 = vsel %vm818, %v536, -inf
        %v835 = vsel %vm819, %v541, -inf
        %v836 = vsel %vm804, %v691, -inf
        %v837 = vsel %vm805, %v696, -inf
        %v838 = vsel %vm806, %v701, -inf
        %v839 = vsel %vm807, %v706, -inf
        %v840 = vsel %vm808, %v711, -inf
        %v841 = vsel %vm809, %v716, -inf
        %v842 = vsel %vm810, %v721, -inf
        %v843 = vsel %vm811, %v726, -inf
        %v844 = vsel %vm812, %v731, -inf
        %v845 = vsel %vm813, %v736, -inf
        %v846 = vsel %vm814, %v741, -inf
        %v847 = vsel %vm815, %v746, -inf
        %v848 = vsel %vm816, %v751, -inf
        %v849 = vsel %vm817, %v756, -inf
        %v850 = vsel %vm818, %v761, -inf
        %v851 = vsel %vm819, %v766, -inf
        %v852 = vld [vmem:[#allocation2] sm:$0x1]
        %v853 = vld [vmem:[#allocation2 + $0x1] sm:$0x1]
        %v854 = vmax.f32 %v820, %v822
        %v855 = vmax.f32 %v821, %v823
        %v856 = vmax.f32 %v854, %v824
        %v857 = vmax.f32 %v855, %v825
        %v858 = vmax.f32 %v856, %v826
        %v859 = vmax.f32 %v857, %v827
        %v860 = vmax.f32 %v858, %v828
        %v861 = vmax.f32 %v859, %v829
        %v862 = vmax.f32 %v860, %v830
        %v863 = vmax.f32 %v861, %v831
        %v864 = vmax.f32 %v862, %v832
        %v865 = vmax.f32 %v863, %v833
        %v866 = vmax.f32 %v864, %v834
        %v867 = vmax.f32 %v865, %v835
        %v868 = vmax.f32 %v866, %v867
        %v869 = vrot.slane %v868, 4
        %v870 = vmax.f32 %v868, %v869
        %v871 = vrot.slane %v870, 2
        %v872 = vmax.f32 %v870, %v871
        %v873 = vrot.slane %v872, 1
        %v874 = vmax.f32 %v872, %v873
        %v875 = vmax.f32 %v836, %v838
        %v876 = vmax.f32 %v837, %v839
        %v877 = vmax.f32 %v875, %v840
        %v878 = vmax.f32 %v876, %v841
        %v879 = vmax.f32 %v877, %v842
        %v880 = vmax.f32 %v878, %v843
        %v881 = vmax.f32 %v879, %v844
        %v882 = vmax.f32 %v880, %v845
        %v883 = vmax.f32 %v881, %v846
        %v884 = vmax.f32 %v882, %v847
        %v885 = vmax.f32 %v883, %v848
        %v886 = vmax.f32 %v884, %v849
        %v887 = vmax.f32 %v885, %v850
        %v888 = vmax.f32 %v886, %v851
        %v889 = vmax.f32 %v887, %v888
        %v890 = vrot.slane %v889, 4
        %v891 = vmax.f32 %v889, %v890
        %v892 = vrot.slane %v891, 2
        %v893 = vmax.f32 %v891, %v892
        %v894 = vrot.slane %v893, 1
        %v895 = vmax.f32 %v893, %v894
        %v896 = vmax.f32 %v852, %v874
        %v897 = vmax.f32 %v853, %v895
        %v898 = vsub.f32 %v852, %v896
        %v899 = vsub.f32 %v853, %v897
        %v900 = vpow.pop %v898
        %v901 = vpow.pop %v899
        %v904 = vlaneseq
        %v905 = vshrl.u32 %v904, 7
        %v906 = vsub.s32 0, %v905
        %v907 = vrot.slane %v896, %v906
        %v908 = vlaneseq
        %v909 = vshrl.u32 %v908, 7
        %v910 = vsub.s32 0, %v909
        %v911 = vrot.slane %v897, %v910
        %v914 = vsub.f32 %v820, %v907
        %v915 = vsub.f32 %v821, %v907
        %v916 = vsub.f32 %v822, %v907
        %v917 = vsub.f32 %v823, %v907
        %v918 = vsub.f32 %v824, %v907
        %v919 = vsub.f32 %v825, %v907
        %v920 = vsub.f32 %v826, %v907
        %v921 = vsub.f32 %v827, %v907
        %v922 = vsub.f32 %v828, %v907
        %v923 = vsub.f32 %v829, %v907
        %v924 = vsub.f32 %v830, %v907
        %v925 = vsub.f32 %v831, %v907
        %v926 = vsub.f32 %v832, %v907
        %v927 = vsub.f32 %v833, %v907
        %v928 = vsub.f32 %v834, %v907
        %v929 = vsub.f32 %v835, %v907
        %v930 = vsub.f32 %v836, %v911
        %v931 = vsub.f32 %v837, %v911
        %v932 = vsub.f32 %v838, %v911
        %v933 = vsub.f32 %v839, %v911
        %v934 = vsub.f32 %v840, %v911
        %v935 = vsub.f32 %v841, %v911
        %v936 = vsub.f32 %v842, %v911
        %v937 = vsub.f32 %v843, %v911
        %v938 = vsub.f32 %v844, %v911
        %v939 = vsub.f32 %v845, %v911
        %v940 = vsub.f32 %v846, %v911
        %v941 = vsub.f32 %v847, %v911
        %v942 = vsub.f32 %v848, %v911
        %v943 = vsub.f32 %v849, %v911
        %v944 = vsub.f32 %v850, %v911
        %v945 = vsub.f32 %v851, %v911
        %v946 = vpow.pop %v914
        %v947 = vpow.pop %v915
        %v948 = vpow.pop %v916
        %v949 = vpow.pop %v917
        %v950 = vpow.pop %v918
        %v951 = vpow.pop %v919
        %v952 = vpow.pop %v920
        %v953 = vpow.pop %v921
        %v954 = vpow.pop %v922
        %v955 = vpow.pop %v923
        %v956 = vpow.pop %v924
        %v957 = vpow.pop %v925
        %v958 = vpow.pop %v926
        %v959 = vpow.pop %v927
        %v960 = vpow.pop %v928
        %v961 = vpow.pop %v929
        %v962 = vpow.pop %v930
        %v963 = vpow.pop %v931
        %v964 = vpow.pop %v932
        %v965 = vpow.pop %v933
        %v966 = vpow.pop %v934
        %v967 = vpow.pop %v935
        %v968 = vpow.pop %v936
        %v969 = vpow.pop %v937
        %v970 = vpow.pop %v938
        %v971 = vpow.pop %v939
        %v972 = vpow.pop %v940
        %v973 = vpow.pop %v941
        %v974 = vpow.pop %v942
        %v975 = vpow.pop %v943
        %v976 = vpow.pop %v944
        %v977 = vpow.pop %v945
        %v978 = vld [vmem:[#allocation3] sm:$0x1]
        %v979 = vld [vmem:[#allocation3 + $0x1] sm:$0x1]
        %v980 = vmul.f32 %v900, %v978
        %v981 = vmul.f32 %v901, %v979
        %v982 = vadd.f32 %v946, %v947
        %v983 = vadd.f32 %v982, %v948
        %v984 = vadd.f32 %v983, %v949
        %v985 = vadd.f32 %v984, %v950
        %v986 = vadd.f32 %v985, %v951
        %v987 = vadd.f32 %v986, %v952
        %v988 = vadd.f32 %v987, %v953
        %v989 = vadd.f32 %v988, %v954
        %v990 = vadd.f32 %v989, %v955
        %v991 = vadd.f32 %v990, %v956
        %v992 = vadd.f32 %v991, %v957
        %v993 = vadd.f32 %v992, %v958
        %v994 = vadd.f32 %v993, %v959
        %v995 = vadd.f32 %v994, %v960
        %v996 = vadd.f32 %v995, %v961
        %v997 = vrot.slane %v996, 4
        %v998 = vadd.f32 %v996, %v997
        %v999 = vrot.slane %v998, 2
        %v1000 = vadd.f32 %v998, %v999
        %v1001 = vrot.slane %v1000, 1
        %v1002 = vadd.f32 %v1000, %v1001
        %v1003 = vadd.f32 %v962, %v963
        %v1004 = vadd.f32 %v1003, %v964
        %v1005 = vadd.f32 %v1004, %v965
        %v1006 = vadd.f32 %v1005, %v966
        %v1007 = vadd.f32 %v1006, %v967
        %v1008 = vadd.f32 %v1007, %v968
        %v1009 = vadd.f32 %v1008, %v969
        %v1010 = vadd.f32 %v1009, %v970
        %v1011 = vadd.f32 %v1010, %v971
        %v1012 = vadd.f32 %v1011, %v972
        %v1013 = vadd.f32 %v1012, %v973
        %v1014 = vadd.f32 %v1013, %v974
        %v1015 = vadd.f32 %v1014, %v975
        %v1016 = vadd.f32 %v1015, %v976
        %v1017 = vadd.f32 %v1016, %v977
        %v1018 = vrot.slane %v1017, 4
        %v1019 = vadd.f32 %v1017, %v1018
        %v1020 = vrot.slane %v1019, 2
        %v1021 = vadd.f32 %v1019, %v1020
        %v1022 = vrot.slane %v1021, 1
        %v1023 = vadd.f32 %v1021, %v1022
        %v1024 = vadd.f32 %v980, %v1002
        %v1025 = vadd.f32 %v981, %v1023
        %1026 = vst [vmem:[#allocation3] sm:$0x1] %v1024
        %1027 = vst [vmem:[#allocation3 + $0x1] sm:$0x1] %v1025
        %1028 = vmatprep.subr.mxu0 0.0
        %1029 = vmatpush1.msra.mxu0 %v946
        %1030 = vmatprep.subr.mxu0 0.0
        %1031 = vmatpush1.msra.mxu0 %v947
        %1032 = vmatprep.subr.mxu0 0.0
        %1033 = vmatpush1.msra.mxu0 %v948
        %1034 = vmatprep.subr.mxu0 0.0
        %1035 = vmatpush1.msra.mxu0 %v949
        %1036 = vmatprep.subr.mxu0 0.0
        %1037 = vmatpush1.msra.mxu0 %v950
        %1038 = vmatprep.subr.mxu0 0.0
        %1039 = vmatpush1.msra.mxu0 %v951
        %1040 = vmatprep.subr.mxu0 0.0
        %1041 = vmatpush1.msra.mxu0 %v952
        %1042 = vmatprep.subr.mxu0 0.0
        %1043 = vmatpush1.msra.mxu0 %v953
        %1044 = vmatprep.subr.mxu0 0.0
        %1045 = vmatpush1.msra.mxu0 %v954
        %1046 = vmatprep.subr.mxu0 0.0
        %1047 = vmatpush1.msra.mxu0 %v955
        %1048 = vmatprep.subr.mxu0 0.0
        %1049 = vmatpush1.msra.mxu0 %v956
        %1050 = vmatprep.subr.mxu0 0.0
        %1051 = vmatpush1.msra.mxu0 %v957
        %1052 = vmatprep.subr.mxu0 0.0
        %1053 = vmatpush1.msra.mxu0 %v958
        %1054 = vmatprep.subr.mxu0 0.0
        %1055 = vmatpush1.msra.mxu0 %v959
        %1056 = vmatprep.subr.mxu0 0.0
        %1057 = vmatpush1.msra.mxu0 %v960
        %1058 = vmatprep.subr.mxu0 0.0
        %1059 = vmatpush1.msra.mxu0 %v961
        %1060 = vmatprep.subr.mxu0 0.0
        %1061 = vmatpush1.msra.mxu0 0.0
        %1062 = vmatprep.subr.mxu0 0.0
        %1063 = vmatpush1.msra.mxu0 0.0
        %1064 = vmatprep.subr.mxu0 0.0
        %1065 = vmatpush1.msra.mxu0 0.0
        %1066 = vmatprep.subr.mxu0 0.0
        %1067 = vmatpush1.msra.mxu0 0.0
        %1068 = vmatprep.subr.mxu0 0.0
        %1069 = vmatpush1.msra.mxu0 0.0
        %1070 = vmatprep.subr.mxu0 0.0
        %1071 = vmatpush1.msra.mxu0 0.0
        %1072 = vmatprep.subr.mxu0 0.0
        %1073 = vmatpush1.msra.mxu0 0.0
        %1074 = vmatprep.subr.mxu0 0.0
        %1075 = vmatpush1.msra.mxu0 0.0
        %1076 = vmatprep.subr.mxu0 0.0
        %1077 = vmatpush1.msra.mxu0 0.0
        %1078 = vmatprep.subr.mxu0 0.0
        %1079 = vmatpush1.msra.mxu0 0.0
        %1080 = vmatprep.subr.mxu0 0.0
        %1081 = vmatpush1.msra.mxu0 0.0
        %1082 = vmatprep.subr.mxu0 0.0
        %1083 = vmatpush1.msra.mxu0 0.0
        %1084 = vmatprep.subr.mxu0 0.0
        %1085 = vmatpush1.msra.mxu0 0.0
        %1086 = vmatprep.subr.mxu0 0.0
        %1087 = vmatpush1.msra.mxu0 0.0
        %1088 = vmatprep.subr.mxu0 0.0
        %1089 = vmatpush1.msra.mxu0 0.0
        %1090 = vmatprep.subr.mxu0 0.0
        %1091 = vmatpush1.msra.mxu0 0.0
        %1092 = vmatprep.mubr.f32.mxu0 0.0
        %1093 = vmatmul.mubr.f32.gmra.mrb[0].mxu0 %v316
        %v1094 = vpop.f32.mrb[0].mxu0
        %v1095 = vadd.f32 0.0, %v1094
        %v1096 = vpop.f32.mrb[0].mxu0
        %1097 = vdwg.mxu0
        %1098 = vmatprep.subr.mxu0 0.0
        %1099 = vmatpush1.msra.mxu0 %v962
        %1100 = vmatprep.subr.mxu0 0.0
        %1101 = vmatpush1.msra.mxu0 %v963
        %1102 = vmatprep.subr.mxu0 0.0
        %1103 = vmatpush1.msra.mxu0 %v964
        %1104 = vmatprep.subr.mxu0 0.0
        %1105 = vmatpush1.msra.mxu0 %v965
        %1106 = vmatprep.subr.mxu0 0.0
        %1107 = vmatpush1.msra.mxu0 %v966
        %1108 = vmatprep.subr.mxu0 0.0
        %1109 = vmatpush1.msra.mxu0 %v967
        %1110 = vmatprep.subr.mxu0 0.0
        %1111 = vmatpush1.msra.mxu0 %v968
        %1112 = vmatprep.subr.mxu0 0.0
        %1113 = vmatpush1.msra.mxu0 %v969
        %1114 = vmatprep.subr.mxu0 0.0
        %1115 = vmatpush1.msra.mxu0 %v970
        %1116 = vmatprep.subr.mxu0 0.0
        %1117 = vmatpush1.msra.mxu0 %v971
        %1118 = vmatprep.subr.mxu0 0.0
        %1119 = vmatpush1.msra.mxu0 %v972
        %1120 = vmatprep.subr.mxu0 0.0
        %1121 = vmatpush1.msra.mxu0 %v973
        %1122 = vmatprep.subr.mxu0 0.0
        %1123 = vmatpush1.msra.mxu0 %v974
        %1124 = vmatprep.subr.mxu0 0.0
        %1125 = vmatpush1.msra.mxu0 %v975
        %1126 = vmatprep.subr.mxu0 0.0
        %1127 = vmatpush1.msra.mxu0 %v976
        %1128 = vmatprep.subr.mxu0 0.0
        %1129 = vmatpush1.msra.mxu0 %v977
        %1130 = vmatprep.subr.mxu0 0.0
        %1131 = vmatpush1.msra.mxu0 0.0
        %1132 = vmatprep.subr.mxu0 0.0
        %1133 = vmatpush1.msra.mxu0 0.0
        %1134 = vmatprep.subr.mxu0 0.0
        %1135 = vmatpush1.msra.mxu0 0.0
        %1136 = vmatprep.subr.mxu0 0.0
        %1137 = vmatpush1.msra.mxu0 0.0
        %1138 = vmatprep.subr.mxu0 0.0
        %1139 = vmatpush1.msra.mxu0 0.0
        %1140 = vmatprep.subr.mxu0 0.0
        %1141 = vmatpush1.msra.mxu0 0.0
        %1142 = vmatprep.subr.mxu0 0.0
        %1143 = vmatpush1.msra.mxu0 0.0
        %1144 = vmatprep.subr.mxu0 0.0
        %1145 = vmatpush1.msra.mxu0 0.0
        %1146 = vmatprep.subr.mxu0 0.0
        %1147 = vmatpush1.msra.mxu0 0.0
        %1148 = vmatprep.subr.mxu0 0.0
        %1149 = vmatpush1.msra.mxu0 0.0
        %1150 = vmatprep.subr.mxu0 0.0
        %1151 = vmatpush1.msra.mxu0 0.0
        %1152 = vmatprep.subr.mxu0 0.0
        %1153 = vmatpush1.msra.mxu0 0.0
        %1154 = vmatprep.subr.mxu0 0.0
        %1155 = vmatpush1.msra.mxu0 0.0
        %1156 = vmatprep.subr.mxu0 0.0
        %1157 = vmatpush1.msra.mxu0 0.0
        %1158 = vmatprep.subr.mxu0 0.0
        %1159 = vmatpush1.msra.mxu0 0.0
        %1160 = vmatprep.subr.mxu0 0.0
        %1161 = vmatpush1.msra.mxu0 0.0
        %1162 = vmatprep.mubr.f32.mxu0 0.0
        %1163 = vmatmul.mubr.f32.gmra.mrb[0].mxu0 %v317
        %v1164 = vpop.f32.mrb[0].mxu0
        %v1165 = vadd.f32 0.0, %v1164
        %v1166 = vpop.f32.mrb[0].mxu0
        %1167 = vdwg.mxu0
        %v1168 = vld [vmem:[#allocation4] sm:$0xff]
        %v1169 = vld [vmem:[#allocation4 + $0x8] sm:$0xff]
        %v1172 = vlaneseq
        %v1173 = vshrl.u32 %v1172, 7
        %v1174 = vsub.s32 0, %v1173
        %v1175 = vrot.slane %v900, %v1174
        %v1176 = vlaneseq
        %v1177 = vshrl.u32 %v1176, 7
        %v1178 = vsub.s32 0, %v1177
        %v1179 = vrot.slane %v901, %v1178
        %v1182 = vmul.f32 %v1175, %v1168
        %v1183 = vmul.f32 %v1179, %v1169
        %v1184 = vadd.f32 %v1182, %v1095
        %v1185 = vadd.f32 %v1183, %v1165
        %1186 = vst [vmem:[#allocation4] sm:$0xff] %v1184
        %1187 = vst [vmem:[#allocation4 + $0x8] sm:$0xff] %v1185
        %1188 = vst [vmem:[#allocation2] sm:$0x1] %v896
        %1189 = vst [vmem:[#allocation2 + $0x1] sm:$0x1] %v897
        // Predicated region
        $region49: #{tpu_custom_call.1} parent=31 // pred_check
          %p1190 = pneg %p300
        $region50: #{tpu_custom_call.1} parent=31 // pred_check_branch
          %1192 = sbr.rel (%p1190) target = $region52
        $region51: #{tpu_custom_call.1} parent=31 // pred_region
          %v1193 = vld [vmem:[#allocation3] sm:$0x1]
          %v1194 = vld [vmem:[#allocation3 + $0x1] sm:$0x1]
          %v1195 = vrcp.pop %v1193
          %v1196 = vmul.f32 1.0, %v1195
          %v1197 = vrcp.pop %v1194
          %v1198 = vmul.f32 1.0, %v1197
          %v1199 = vld [vmem:[#allocation4] sm:$0xff]
          %v1200 = vld [vmem:[#allocation4 + $0x8] sm:$0xff]
          %v1203 = vlaneseq
          %v1204 = vshrl.u32 %v1203, 7
          %v1205 = vsub.s32 0, %v1204
          %v1206 = vrot.slane %v1196, %v1205
          %v1207 = vlaneseq
          %v1208 = vshrl.u32 %v1207, 7
          %v1209 = vsub.s32 0, %v1208
          %v1210 = vrot.slane %v1198, %v1209
          %v1213 = vmul.f32 %v1199, %v1206
          %v1214 = vmul.f32 %v1200, %v1210
          %1215 = vst [vmem:[%s295] sm:$0xff] %v1213
          %1216 = vst [vmem:[%s295 + $0x8] sm:$0xff] %v1214
        $region52: #{tpu_custom_call.1} parent=31 // pred_fallthru
          _
        %s1217 = sand.u32 %s136, 1
        %s1218 = scalar_lea.sflag [#allocation7], %s1217
        %s1219 = sand.u32 %s136, 1
        %s1220 = smul.addr %s1219, 16
        %s1221 = scalar_lea.vmem [#allocation11], %s1220
        // Predicated region
        $region53: #{tpu_custom_call.1} parent=31 // pred_check
          %p1222 = pneg %p146
        $region54: #{tpu_custom_call.1} parent=31 // pred_check_branch
          %1224 = sbr.rel (%p1222) target = $region56
        $region55: #{tpu_custom_call.1} parent=31 // pred_region
          %s1225 = smul.u32 2, %s28
          %s1227 = ssub.s32 256, 256
          %1228 = vsyncadd %s1218, %s1227
          %s1229 = sadd.s32 %s29, %s1225
          %s1230 = smul.addr %s1229, 128
          %s1231 = scalar_lea.hbm %s3, %s1230
          %s1232 = sshll.u32 %s1221, 4
          %s1233 = int_to_ptr.vmem [resolvable:$true] %s1232
          %1238 = dma.vmem_to_hbm [thread:$0]  %s1233, 256, %s1231, %s1218, 128, 128, 8
        $region56: #{tpu_custom_call.1} parent=31 // pred_fallthru
          _
      $region32: #{tpu_custom_call.1} parent=5 // pred_fallthru
        _
      %p1239 = scmp.le.s32.totalorder 2, %s18
      // Predicated region
      $region57: #{tpu_custom_call.1} parent=5 // pred_check
        %p1240 = pneg %p1239
      $region58: #{tpu_custom_call.1} parent=5 // pred_check_branch
        %1242 = sbr.rel (%p1240) target = $region60
      $region59: #{tpu_custom_call.1} parent=5 // pred_region
        %s1243 = ssub.s32 %s18, 2
        // Predicated region
        $region61: #{tpu_custom_call.1} parent=59 // pred_check
          %p1244 = pneg %p152
        $region62: #{tpu_custom_call.1} parent=59 // pred_check_branch
          %1246 = sbr.rel (%p1244) target = $region64
        $region63: #{tpu_custom_call.1} parent=59 // pred_region
          %s1247 = sand.u32 %s137, 1
          %s1248 = scalar_lea.sflag [#allocation7], %s1247
          %s1249 = sand.u32 %s137, 1
          %s1250 = smul.addr %s1249, 16
          %s1251 = scalar_lea.vmem [#allocation11], %s1250
          %1252 = dma.done %s1248, 256
        $region64: #{tpu_custom_call.1} parent=59 // pred_fallthru
          _
      $region60: #{tpu_custom_call.1} parent=5 // pred_fallthru
        _
    $region6: #{tpu_custom_call.1} parent=1 // loop_footer
      %s22 = sadd.s32 1, %s18
    $region7: #{tpu_custom_call.1} parent=1 // loop_footer_branch
      %17 = sbr.rel target = $region3
    $region8: #{tpu_custom_call.1} parent=1 // loop_exit
      _
    %1253 = vsyncpa [#allocation6], 1
    %s1254 = scalar_lea.sflag [#allocation6], 1
    %1255 = vsyncpa %s1254, 1
    %1256 = vsyncpa [#allocation9], 1
    %s1257 = scalar_lea.sflag [#allocation9], 1
    %1258 = vsyncpa %s1257, 1
    %1259 = vsyncpa [#allocation7], 1
    %s1260 = scalar_lea.sflag [#allocation7], 1
    %1261 = vsyncpa %s1260, 1

</llo_original>
